<compile_context>
chip_gen: v5e
topology: v5e:2x2
jax: 0.10.0
libtpu: 0.0.40
codegen_flags: <defaults>
</compile_context>

<pallas_src>
import functools

import jax
import jax.numpy as jnp
from jax.experimental import pallas as pl
from jax.experimental.pallas import tpu as pltpu


def _myloss_kernel(natoms_ref, x_ref, y_ref, out_ref, acc_ref, *,
                   tile_rows, natoms_resident):
    """Per-shard partial sum of ((x - y) * (1/natoms))**2.

    grid = (row_shards ["parallel"], row_tiles_per_shard ["arbitrary"]).
    """
    i = pl.program_id(0)   # parallel row shard (megacore on v7x)
    j = pl.program_id(1)   # reduction axis: row tile within the shard

    @pl.when(j == 0)
    def _init():
        acc_ref[...] = jnp.zeros_like(acc_ref)

    if natoms_resident:
        # natoms sits resident in VMEM; slice this tile's rows (static size).
        row0 = pl.multiple_of((i * pl.num_programs(1) + j) * tile_rows, 8)
        n_tile = natoms_ref[pl.ds(row0, tile_rows), :]          # (tile_rows, 1)
    else:
        n_tile = natoms_ref[...]                                # (tile_rows, 1)

    # Reciprocal (EUP) + broadcast multiply (VPU) instead of an f32 divide.
    # approx=False keeps ~bit-level parity with the PyTorch divide.
    inv = pl.reciprocal(n_tile, approx=False)
    d = (x_ref[...].astype(jnp.float32)
         - y_ref[...].astype(jnp.float32)) * inv                # (tile_rows, D)
    acc_ref[...] += d * d                                       # elementwise, VPU only

    @pl.when(j == pl.num_programs(1) - 1)
    def _finalize():
        # Single cross-lane/sublane reduction per shard.
        out_ref[...] = jnp.sum(acc_ref[...], keepdims=True).reshape(1, 1, 1)


def my_loss(x, natoms, y, *, target_tile_bytes=2 << 20, num_row_shards=2,
            vmem_limit_bytes=32 << 20):
    """Scalar mean(((x - y) / natoms)**2). x, y: [N, D]; natoms: [N, 1]."""
    assert x.shape == y.shape and x.ndim == 2
    N, D = x.shape
    assert natoms.shape == (N, 1)

    # Keep x / y in their HBM dtype (bf16 stays bf16); upcast inside the kernel.
    itemsize = jnp.dtype(x.dtype).itemsize
    natoms = natoms.astype(jnp.float32)

    cdiv = lambda a, b: -(-a // b)

    # Biggest row tile (multiple of 8) giving ~target_tile_bytes per input
    # block, capped at one shard's worth of rows. VMEM use per core ~=
    # 2 inputs x 2 buffers x tile + f32 accumulator (~5x tile bytes) << limit.
    tile_rows = max(8, (target_tile_bytes // max(1, D * itemsize)) // 8 * 8)
    rows_per_shard = cdiv(N, num_row_shards)
    tile_rows = min(tile_rows, max(8, cdiv(rows_per_shard, 8) * 8))

    blocks_per_shard = cdiv(N, num_row_shards * tile_rows)
    N_pad = num_row_shards * blocks_per_shard * tile_rows

    if N_pad != N:
        pad = N_pad - N
        # Padded rows: x == y == 0 and natoms == 1  =>  zero contribution.
        x = jnp.pad(x, ((0, pad), (0, 0)))
        y = jnp.pad(y, ((0, pad), (0, 0)))
        natoms = jnp.pad(natoms, ((0, pad), (0, 0)), constant_values=1.0)

    # natoms is only N x 4 bytes in HBM; keep it resident in VMEM (one DMA
    # total) unless its lane-padded VMEM footprint would get large.
    natoms_resident = (N_pad * 128 * 4) <= (2 << 20)
    if natoms_resident:
        natoms_spec = pl.BlockSpec((N_pad, 1), lambda i, j: (0, 0))
    else:
        natoms_spec = pl.BlockSpec(
            (tile_rows, 1), lambda i, j: (i * blocks_per_shard + j, 0))

    row_block = lambda i, j: (i * blocks_per_shard + j, 0)

    kernel = functools.partial(_myloss_kernel, tile_rows=tile_rows,
                               natoms_resident=natoms_resident)

    partials = pl.pallas_call(
        kernel,
        out_shape=jax.ShapeDtypeStruct((num_row_shards, 1, 1), jnp.float32),
        grid_spec=pltpu.PrefetchScalarGridSpec(
            num_scalar_prefetch=0,
            grid=(num_row_shards, blocks_per_shard),
            in_specs=[
                natoms_spec,                                  # natoms
                pl.BlockSpec((tile_rows, D), row_block),      # input (target)
                pl.BlockSpec((tile_rows, D), row_block),      # output (prediction)
            ],
            out_specs=pl.BlockSpec((1, 1, 1), lambda i, j: (i, 0, 0)),
            scratch_shapes=[pltpu.VMEM((tile_rows, D), jnp.float32)],
        ),
        compiler_params=pltpu.CompilerParams(
            dimension_semantics=("parallel", "arbitrary"),
            vmem_limit_bytes=vmem_limit_bytes,
        ),
    )(natoms, x, y)

    # Combine per-shard partials and take the mean over the *unpadded* count.
    return jnp.sum(partials) / jnp.float32(N * D)


if __name__ == "__main__":
    key = jax.random.PRNGKey(0)
    k1, k2, k3 = jax.random.split(key, 3)

    N, D = 64, 128  # small synthetic shapes: N rows of D-dim targets
    x = jax.random.normal(k1, (N, D), dtype=jnp.float32)          # "input"  (target)
    y = jax.random.normal(k2, (N, D), dtype=jnp.float32)          # "output" (prediction)
    natoms = jax.random.randint(k3, (N, 1), 1, 10).astype(jnp.float32)

    loss = my_loss(x, natoms, y)
    loss = jax.block_until_ready(loss)

    # Pure-JAX reference check.
    ref = jnp.mean(((x - y) / natoms) ** 2)
    assert jnp.allclose(loss, ref, rtol=1e-5, atol=1e-6), (loss, ref)

    print("KERNEL_OK")
</pallas_src>

<mosaic_0001>
module attributes {stable_mosaic.version = 11 : i64} {
  func.func @_myloss_kernel(%arg0: i32, %arg1: i32, %arg2: memref<64x1xf32, #tpu.memory_space<vmem>>, %arg3: memref<32x128xf32, #tpu.memory_space<vmem>>, %arg4: memref<32x128xf32, #tpu.memory_space<vmem>>, %arg5: memref<1x1x1xf32, #tpu.memory_space<vmem>>, %arg6: memref<32x128xf32, #tpu.memory_space<vmem>>) attributes {dimension_semantics = [#tpu.dimension_semantics<parallel>, #tpu.dimension_semantics<arbitrary>], iteration_bounds = array<i64: 2, 1>, scalar_prefetch = 0 : i64, scratch_operands = 1 : i64, tpu.core_type = #tpu.core_type<tc>, window_params = [{pipeline_mode = #tpu.pipeline_mode<synchronous>, transform_indices = @transform_0, window_bounds = array<i64: 64, 1>}, {transform_indices = @transform_1, window_bounds = array<i64: 32, 128>}, {transform_indices = @transform_2, window_bounds = array<i64: 32, 128>}, {transform_indices = @transform_3, window_bounds = array<i64: 1, 1, 1>}]} {
    %c0_i32 = arith.constant 0 : i32
    %0 = arith.cmpi eq, %arg1, %c0_i32 : i32
    %1 = arith.extui %0 : i1 to i32
    %c0_i32_0 = arith.constant 0 : i32
    %2 = arith.cmpi ne, %1, %c0_i32_0 : i32
    scf.if %2 {
      %cst = arith.constant 0.000000e+00 : f32
      %22 = vector.broadcast %cst : f32 to vector<32x128xf32>
      %c0_11 = arith.constant 0 : index
      %c0_12 = arith.constant 0 : index
      %23 = vector.load %arg6[%c0_11, %c0_12] : memref<32x128xf32, #tpu.memory_space<vmem>>, vector<32x128xf32>
      tpu.vector_store %arg6[%c0_11, %c0_12], %22 {strides = array<i32>} : memref<32x128xf32, #tpu.memory_space<vmem>>, vector<32x128xf32>,
    } else {
    }
    %c1_i32 = arith.constant 1 : i32
    %3 = arith.muli %arg0, %c1_i32 : i32
    %4 = arith.addi %3, %arg1 : i32
    %c32_i32 = arith.constant 32 : i32
    %5 = arith.muli %4, %c32_i32 : i32
    %6 = tpu.assume_multiple %5, 8 : i32
    %7 = arith.index_cast %6 : i32 to index
    %c0 = arith.constant 0 : index
    %8 = vector.load %arg2[%7, %c0] : memref<64x1xf32, #tpu.memory_space<vmem>>, vector<32x1xf32>
    %9 = tpu.reciprocal %8 : vector<32x1xf32> -> vector<32x1xf32>
    %c0_1 = arith.constant 0 : index
    %c0_2 = arith.constant 0 : index
    %10 = vector.load %arg3[%c0_1, %c0_2] : memref<32x128xf32, #tpu.memory_space<vmem>>, vector<32x128xf32>
    %c0_3 = arith.constant 0 : index
    %c0_4 = arith.constant 0 : index
    %11 = vector.load %arg4[%c0_3, %c0_4] : memref<32x128xf32, #tpu.memory_space<vmem>>, vector<32x128xf32>
    %12 = arith.subf %10, %11 : vector<32x128xf32>
    %13 = vector.broadcast %9 : vector<32x1xf32> to vector<32x128xf32>
    %14 = arith.mulf %12, %13 : vector<32x128xf32>
    %c0_5 = arith.constant 0 : index
    %c0_6 = arith.constant 0 : index
    %15 = vector.load %arg6[%c0_5, %c0_6] : memref<32x128xf32, #tpu.memory_space<vmem>>, vector<32x128xf32>
    %16 = arith.mulf %14, %14 : vector<32x128xf32>
    %17 = arith.addf %15, %16 : vector<32x128xf32>
    %c0_7 = arith.constant 0 : index
    %c0_8 = arith.constant 0 : index
    %18 = vector.load %arg6[%c0_7, %c0_8] : memref<32x128xf32, #tpu.memory_space<vmem>>, vector<32x128xf32>
    tpu.vector_store %arg6[%c0_7, %c0_8], %17 {strides = array<i32>} : memref<32x128xf32, #tpu.memory_space<vmem>>, vector<32x128xf32>,
    %c0_i32_9 = arith.constant 0 : i32
    %19 = arith.cmpi eq, %arg1, %c0_i32_9 : i32
    %20 = arith.extui %19 : i1 to i32
    %c0_i32_10 = arith.constant 0 : i32
    %21 = arith.cmpi ne, %20, %c0_i32_10 : i32
    scf.if %21 {
      %c0_11 = arith.constant 0 : index
      %c0_12 = arith.constant 0 : index
      %22 = vector.load %arg6[%c0_11, %c0_12] : memref<32x128xf32, #tpu.memory_space<vmem>>, vector<32x128xf32>
      %23 = vector.shape_cast %22 : vector<32x128xf32> to vector<1x32x128xf32>
      %cst = arith.constant dense<0.000000e+00> : vector<1xf32>
      %24 = vector.multi_reduction <add>, %23, %cst [1, 2] : vector<1x32x128xf32> to vector<1xf32>
      %25 = vector.shape_cast %24 : vector<1xf32> to vector<1x1x1xf32>
      %26 = vector.extract %25[0, 0, 0] : f32 from vector<1x1x1xf32>
      %27 = vector.broadcast %26 : f32 to vector<1x1xf32>
      %28 = vector.shape_cast %27 : vector<1x1xf32> to vector<1x1x1xf32>
      %c0_13 = arith.constant 0 : index
      %c0_14 = arith.constant 0 : index
      %c0_15 = arith.constant 0 : index
      %29 = vector.load %arg5[%c0_13, %c0_14, %c0_15] : memref<1x1x1xf32, #tpu.memory_space<vmem>>, vector<1x1x1xf32>
      tpu.vector_store %arg5[%c0_13, %c0_14, %c0_15], %28 {strides = array<i32>} : memref<1x1x1xf32, #tpu.memory_space<vmem>>, vector<1x1x1xf32>,
    } else {
    }
    return
  }
  func.func @transform_0(%arg0: i32, %arg1: i32) -> (i32, i32) {
    %c0_i32 = arith.constant 0 : i32
    %c0_i32_0 = arith.constant 0 : i32
    %c0_i32_1 = arith.constant 0 : i32
    return %c0_i32, %c0_i32_0 : i32, i32
  }
  func.func @transform_1(%arg0: i32, %arg1: i32) -> (i32, i32) {
    %c1_i32 = arith.constant 1 : i32
    %0 = arith.muli %arg0, %c1_i32 : i32
    %1 = arith.addi %0, %arg1 : i32
    %c0_i32 = arith.constant 0 : i32
    %c0_i32_0 = arith.constant 0 : i32
    return %1, %c0_i32 : i32, i32
  }
  func.func @transform_2(%arg0: i32, %arg1: i32) -> (i32, i32) {
    %c1_i32 = arith.constant 1 : i32
    %0 = arith.muli %arg0, %c1_i32 : i32
    %1 = arith.addi %0, %arg1 : i32
    %c0_i32 = arith.constant 0 : i32
    %c0_i32_0 = arith.constant 0 : i32
    return %1, %c0_i32 : i32, i32
  }
  func.func @transform_3(%arg0: i32, %arg1: i32) -> (i32, i32, i32) {
    %c0_i32 = arith.constant 0 : i32
    %c0_i32_0 = arith.constant 0 : i32
    %c0_i32_1 = arith.constant 0 : i32
    return %arg0, %c0_i32, %c0_i32_0 : i32, i32, i32
  }
}

</mosaic_0001>

<llo_original>
// kernel: tpu_custom_call.1
$region0: #{tpu_custom_call.1}
  #allocation0 [shape = 'u32[]', space=smem, size = 0x4, offset = 0x4, fixed_abs, tag = 'smem constant byte address 0x4 - core index']
  #allocation1 [shape = 'u32[72,128]{1,0:T(1,128)}', space=vmem, size = 0x9000, scoped, tag = 'internal scratch']
  #allocation2 [shape = 'f32[32,128]{1,0:T(8,128)}', space=vmem, size = 0x4000, scoped, tag = 'scratch operand']
  %s0 = inlined_call_operand.vmem [shape: f32[64,1], index: 0, kind: input, shape index: {}]
  %s1 = inlined_call_operand.vmem [shape: f32[64,128], index: 1, kind: input, shape index: {}]
  %s2 = inlined_call_operand.hbm [shape: f32[64,128], index: 2, kind: input, shape index: {}]
  %s3 = inlined_call_operand.vmem [shape: f32[2,1,1], index: 3, kind: output, shape index: {}]
  %s4 = sld [smem:[#allocation0]]
  $region57: #{tpu_custom_call.1} parent=0
    _
  %s6 = ssub.s32 1, %s4
  %s7 = scalar_select 0, %s6, %s4
  $region1: #{tpu_custom_call.1} parent=0
    #allocation3 [shape = 'u8[32768]{0}', space=vmem, size = 0x8000, scoped, tag = 'input window, operand 2']
    #allocation4 [shape = 's32[2]{0}', space=sflag, size = 0x8, scoped, tag = 'scoped memory for tpu_custom_call.1']
    %8 = vsyncpa [#allocation4], 0
    %s9 = scalar_lea.sflag [#allocation4], 1
    %10 = vsyncpa %s9, 0
    loop: start=0, step=1, limit=4
    $region2: #{tpu_custom_call.1} parent=1 // loop_pre_header
      _
    $region3: #{tpu_custom_call.1} parent=1 // loop_header
      %s12 = sphi 0, %s16
      %p13 = scmp.ge.s32.totalorder %s12, 4
      %s19 = sphi 0, %s31
      %s20 = sphi 0, %s27
      %s21 = sphi 0, %s19
      %s22 = sphi 0, %s20
      %s23 = sphi 0, %s21
      %s24 = sphi 0, %s22
      %s32 = sphi 0, %s32
      %s34 = sphi 0, %s32
      %s35 = sphi 0, %s34
      %s49 = sphi 0, %s35
      %s57 = sphi 0, %s59
      %s60 = sphi 0, %s57
      %s61 = sphi 0, %s60
      %s77 = sphi 0, %s61
      %s85 = sphi 0, %s87
      %s88 = sphi 0, %s85
      %s89 = sphi 0, %s88
      %s105 = sphi 0, %s89
      %s111 = sphi 0, %s113
      %s114 = sphi 0, %s111
      %s115 = sphi 0, %s114
      %s131 = sphi 0, %s115
    $region4: #{tpu_custom_call.1} parent=1 // loop_header_branch
      %15 = sbr.rel (%p13) target = $region8
    $region5: #{tpu_custom_call.1} parent=1 // loop_body
      %s17 = ssub.s32 %s12, 1
      %s18 = ssub.s32 %s12, 2
      %s25 = sadd.s32 1, %s20
      %p26 = scmp.ge.s32.totalorder %s25, 1
      %s27 = scalar_select %p26, 0, %s25
      %s28 = sadd.s32 1, %s19
      %s29 = scalar_select %p26, %s28, %s19
      %p30 = scmp.ge.s32.totalorder %s29, 2
      %s31 = scalar_select %p30, 0, %s29
      %s33 = sadd.s32 %s32, 1
      %p36 = scmp.eq.s32.totalorder %s12, 1
      %p37 = scmp.ne.s32.totalorder %s32, %s34
      %p38 = scmp.eq.s32.totalorder %s12, 0
      %p39 = por %p37, %p38
      %p40 = scmp.ne.s32.totalorder %s32, %s34
      %p41 = scmp.eq.s32.totalorder %s17, 1
      %p42 = por %p40, %p41
      %p43 = scmp.ne.s32.totalorder %s34, %s35
      %p44 = scmp.eq.s32.totalorder %s17, 0
      %p45 = por %p43, %p44
      %p46 = scmp.ne.s32.totalorder %s34, %s35
      %p47 = scmp.eq.s32.totalorder %s18, 1
      %p48 = por %p46, %p47
      %p50 = scmp.ne.s32.totalorder %s35, %s49
      %p51 = scmp.eq.s32.totalorder %s18, 0
      %p52 = por %p50, %p51
      %s53 = sadd.s32 %s19, %s20
      %s54 = sadd.s32 %s31, %s27
      %s55 = ssub.s32 %s53, %s54
      %p56 = scmp.eq.s32.totalorder %s55, 0
      %s58 = sadd.s32 %s57, 1
      %s59 = scalar_select %p56, %s57, %s58
      %p62 = pneg %p56
      %p63 = scmp.eq.s32.totalorder %s12, 1
      %p64 = por %p62, %p63
      %p65 = scmp.ne.s32.totalorder %s57, %s60
      %p66 = scmp.eq.s32.totalorder %s12, 0
      %p67 = por %p65, %p66
      %p68 = scmp.ne.s32.totalorder %s57, %s60
      %p69 = scmp.eq.s32.totalorder %s17, 1
      %p70 = por %p68, %p69
      %p71 = scmp.ne.s32.totalorder %s60, %s61
      %p72 = scmp.eq.s32.totalorder %s17, 0
      %p73 = por %p71, %p72
      %p74 = scmp.ne.s32.totalorder %s60, %s61
      %p75 = scmp.eq.s32.totalorder %s18, 1
      %p76 = por %p74, %p75
      %p78 = scmp.ne.s32.totalorder %s61, %s77
      %p79 = scmp.eq.s32.totalorder %s18, 0
      %p80 = por %p78, %p79
      %s81 = sadd.s32 %s19, %s20
      %s82 = sadd.s32 %s31, %s27
      %s83 = ssub.s32 %s81, %s82
      %p84 = scmp.eq.s32.totalorder %s83, 0
      %s86 = sadd.s32 %s85, 1
      %s87 = scalar_select %p84, %s85, %s86
      %p90 = pneg %p84
      %p91 = scmp.eq.s32.totalorder %s12, 1
      %p92 = por %p90, %p91
      %p93 = scmp.ne.s32.totalorder %s85, %s88
      %p94 = scmp.eq.s32.totalorder %s12, 0
      %p95 = por %p93, %p94
      %p96 = scmp.ne.s32.totalorder %s85, %s88
      %p97 = scmp.eq.s32.totalorder %s17, 1
      %p98 = por %p96, %p97
      %p99 = scmp.ne.s32.totalorder %s88, %s89
      %p100 = scmp.eq.s32.totalorder %s17, 0
      %p101 = por %p99, %p100
      %p102 = scmp.ne.s32.totalorder %s88, %s89
      %p103 = scmp.eq.s32.totalorder %s18, 1
      %p104 = por %p102, %p103
      %p106 = scmp.ne.s32.totalorder %s89, %s105
      %p107 = scmp.eq.s32.totalorder %s18, 0
      %p108 = por %p106, %p107
      %s109 = ssub.s32 %s19, %s31
      %p110 = scmp.eq.s32.totalorder %s109, 0
      %s112 = sadd.s32 %s111, 1
      %s113 = scalar_select %p110, %s111, %s112
      %p116 = pneg %p110
      %p117 = scmp.eq.s32.totalorder %s12, 1
      %p118 = por %p116, %p117
      %p119 = scmp.ne.s32.totalorder %s111, %s114
      %p120 = scmp.eq.s32.totalorder %s12, 0
      %p121 = por %p119, %p120
      %p122 = scmp.ne.s32.totalorder %s111, %s114
      %p123 = scmp.eq.s32.totalorder %s17, 1
      %p124 = por %p122, %p123
      %p125 = scmp.ne.s32.totalorder %s114, %s115
      %p126 = scmp.eq.s32.totalorder %s17, 0
      %p127 = por %p125, %p126
      %p128 = scmp.ne.s32.totalorder %s114, %s115
      %p129 = scmp.eq.s32.totalorder %s18, 1
      %p130 = por %p128, %p129
      %p132 = scmp.ne.s32.totalorder %s115, %s131
      %p133 = scmp.eq.s32.totalorder %s18, 0
      %p134 = por %p132, %p133
      %p135 = scmp.le.s32.totalorder 1, %s12
      %p136 = scmp.lt.s32.totalorder %s12, 3
      %p137 = pnand %p135, %p136
      %p138 = pneg %p137
      // Predicated region
      $region9: #{tpu_custom_call.1} parent=5 // pred_check
        _
      $region10: #{tpu_custom_call.1} parent=5 // pred_check_branch
        %140 = sbr.rel (%p137) target = $region12
      $region11: #{tpu_custom_call.1} parent=5 // pred_region
        %s141 = ssub.s32 %s12, 1
        // Predicated region
        $region13: #{tpu_custom_call.1} parent=11 // pred_check
          %p142 = pneg %p45
        $region14: #{tpu_custom_call.1} parent=11 // pred_check_branch
          %144 = sbr.rel (%p142) target = $region16
        $region15: #{tpu_custom_call.1} parent=11 // pred_region
          _
        $region16: #{tpu_custom_call.1} parent=11 // pred_fallthru
          _
      $region12: #{tpu_custom_call.1} parent=5 // pred_fallthru
        _
      %p145 = scmp.lt.s32.totalorder %s12, 2
      // Predicated region
      $region17: #{tpu_custom_call.1} parent=5 // pred_check
        %p146 = pneg %p145
      $region18: #{tpu_custom_call.1} parent=5 // pred_check_branch
        %148 = sbr.rel (%p146) target = $region20
      $region19: #{tpu_custom_call.1} parent=5 // pred_region
        // Predicated region
        $region21: #{tpu_custom_call.1} parent=19 // pred_check
          %p149 = pneg %p67
        $region22: #{tpu_custom_call.1} parent=19 // pred_check_branch
          %151 = sbr.rel (%p149) target = $region24
        $region23: #{tpu_custom_call.1} parent=19 // pred_region
          %s152 = sadd.s32 %s19, %s20
          %s153 = smul.u32 4, %s152
          %p154 = scmp.lt.s32.totalorder %s153, 7
          %s155 = scalar_select %p154, %s153, 7
          %s156 = smul.addr %s155, 8
          %s157 = scalar_lea.vmem %s1, %s156
          %s158 = sadd.s32 %s19, %s20
          %s159 = smul.u32 4, %s158
        $region24: #{tpu_custom_call.1} parent=19 // pred_fallthru
          _
        // Predicated region
        $region25: #{tpu_custom_call.1} parent=19 // pred_check
          %p160 = pneg %p95
        $region26: #{tpu_custom_call.1} parent=19 // pred_check_branch
          %162 = sbr.rel (%p160) target = $region28
        $region27: #{tpu_custom_call.1} parent=19 // pred_region
          %s163 = sand.u32 %s85, 1
          %s164 = scalar_lea.sflag [#allocation4], %s163
          %s165 = sand.u32 %s85, 1
          %s166 = smul.addr %s165, 32
          %s167 = scalar_lea.vmem [#allocation3], %s166
          %s168 = sadd.s32 %s19, %s20
          %s169 = smul.u32 4, %s168
          %171 = vsyncadd %s164, 0
          %s172 = smul.addr %s169, 8
          %s173 = scalar_lea.hbm %s2, %s172
          %s174 = sshll.u32 %s173, 4
          %s175 = int_to_ptr.hbm [resolvable:$true] %s174
          %s176 = sshll.u32 %s167, 4
          %s177 = int_to_ptr.vmem [resolvable:$true] %s176
          %182 = dma.hbm_to_vmem [thread:$0]  %s175, 512, %s177, %s164, 128, 128, 8
        $region28: #{tpu_custom_call.1} parent=19 // pred_fallthru
          _
      $region20: #{tpu_custom_call.1} parent=5 // pred_fallthru
        _
      %p183 = scmp.le.s32.totalorder 1, %s12
      %p184 = scmp.lt.s32.totalorder %s12, 3
      %p185 = pnand %p183, %p184
      %p186 = pneg %p185
      // Predicated region
      $region29: #{tpu_custom_call.1} parent=5 // pred_check
        _
      $region30: #{tpu_custom_call.1} parent=5 // pred_check_branch
        %188 = sbr.rel (%p185) target = $region32
      $region31: #{tpu_custom_call.1} parent=5 // pred_region
        %s189 = ssub.s32 %s12, 1
        %s190 = sand.u32 %s88, 1
        %s191 = scalar_lea.sflag [#allocation4], %s190
        %s192 = sand.u32 %s88, 1
        %s193 = smul.addr %s192, 32
        %s194 = scalar_lea.vmem [#allocation3], %s193
        // Predicated region
        $region33: #{tpu_custom_call.1} parent=31 // pred_check
          %p195 = pneg %p101
        $region34: #{tpu_custom_call.1} parent=31 // pred_check_branch
          %197 = sbr.rel (%p195) target = $region36
        $region35: #{tpu_custom_call.1} parent=31 // pred_region
          %199 = dma.done %s191, 512
        $region36: #{tpu_custom_call.1} parent=31 // pred_fallthru
          _
        %p200 = pneg %p45
        %p201 = pneg %p42
        %s202 = sadd.s32 %s21, %s22
        %s203 = smul.u32 4, %s202
        %p204 = scmp.lt.s32.totalorder %s203, 7
        %s205 = scalar_select %p204, %s203, 7
        %s206 = smul.addr %s205, 8
        %s207 = scalar_lea.vmem %s1, %s206
        %p208 = pneg %p73
        %p209 = pneg %p70
        %s210 = sand.u32 %s88, 1
        %s211 = scalar_lea.sflag [#allocation4], %s210
        %s212 = sand.u32 %s88, 1
        %s213 = smul.addr %s212, 32
        %s214 = scalar_lea.vmem [#allocation3], %s213
        %p215 = pneg %p101
        %p216 = pneg %p98
        %p217 = pneg %p127
        %p218 = pneg %p124
        %p219 = scmp.lt.s32.totalorder %s21, 1
        %s220 = scalar_select %p219, %s21, 1
        %s221 = scalar_lea.vmem %s3, %s220
        %s222 = sadd.s32 %s21, %s22
        %s223 = smul.u32 4, %s222
        %p224 = scmp.lt.s32.totalorder %s223, 7
        %s225 = scalar_select %p224, %s223, 7
        %s226 = smul.addr %s225, 8
        %s227 = scalar_lea.vmem %s1, %s226
        %s228 = sadd.s32 %s21, %s22
        %s229 = smul.u32 4, %s228
        %s230 = sadd.s32 %s21, %s22
        %s231 = smul.u32 4, %s230
        %p232 = scmp.lt.s32.totalorder %s21, 1
        %s233 = scalar_select %p232, %s21, 1
        %s234 = scalar_lea.vmem %s3, %s233
        %p235 = scmp.eq.s32.totalorder %s22, 0
        // Predicated region
        $region37: #{tpu_custom_call.1} parent=31 // pred_check
          %p236 = pneg %p235
        $region38: #{tpu_custom_call.1} parent=31 // pred_check_branch
          %238 = sbr.rel (%p236) target = $region40
        $region39: #{tpu_custom_call.1} parent=31 // pred_region
          %239 = vst [vmem:[#allocation2] sm:$0xff] 0.0
          %240 = vst [vmem:[#allocation2 + $0x8] sm:$0xff] 0.0
          %241 = vst [vmem:[#allocation2 + $0x10] sm:$0xff] 0.0
          %242 = vst [vmem:[#allocation2 + $0x18] sm:$0xff] 0.0
        $region40: #{tpu_custom_call.1} parent=31 // pred_fallthru
          _
        %s243 = sadd.s32 %s21, %s22
        %s244 = smul.u32 %s243, 32
        %s245 = scalar_lea.vmem %s0, %s244
        %v246 = vld [vmem:[%s245] sm:$0xff]
        %v247 = vld [vmem:[%s245 + $0x8] sm:$0xff]
        %v248 = vld [vmem:[%s245 + $0x10] sm:$0xff]
        %v249 = vld [vmem:[%s245 + $0x18] sm:$0xff]
        %v250 = vrcp.pop %v246
        %v251 = vmul.f32 %v246, %v250
        %v252 = vsub.f32 1.0, %v251
        %v253 = vmul.f32 %v250, %v252
        %v254 = vadd.f32 %v250, %v253
        %vm255 = vweird.f32 %v246
        %vm256 = vweird.f32 %v250
        %vm257 = vmor %vm255, %vm256
        %v258 = vsel %vm257, %v250, %v254
        %v259 = vand.u32 2147483647, %v246
        %vm260 = vcmp.eq.f32.partialorder %v259, 8.507059e+37
        %v261 = vand.u32 %v246, 2147483648
        %v262 = vor.u32 1.1754944e-38, %v261
        %v263 = vsel %vm260, %v262, %v258
        %v264 = vrcp.pop %v247
        %v265 = vmul.f32 %v247, %v264
        %v266 = vsub.f32 1.0, %v265
        %v267 = vmul.f32 %v264, %v266
        %v268 = vadd.f32 %v264, %v267
        %vm269 = vweird.f32 %v247
        %vm270 = vweird.f32 %v264
        %vm271 = vmor %vm269, %vm270
        %v272 = vsel %vm271, %v264, %v268
        %v273 = vand.u32 2147483647, %v247
        %vm274 = vcmp.eq.f32.partialorder %v273, 8.507059e+37
        %v275 = vand.u32 %v247, 2147483648
        %v276 = vor.u32 1.1754944e-38, %v275
        %v277 = vsel %vm274, %v276, %v272
        %v278 = vrcp.pop %v248
        %v279 = vmul.f32 %v248, %v278
        %v280 = vsub.f32 1.0, %v279
        %v281 = vmul.f32 %v278, %v280
        %v282 = vadd.f32 %v278, %v281
        %vm283 = vweird.f32 %v248
        %vm284 = vweird.f32 %v278
        %vm285 = vmor %vm283, %vm284
        %v286 = vsel %vm285, %v278, %v282
        %v287 = vand.u32 2147483647, %v248
        %vm288 = vcmp.eq.f32.partialorder %v287, 8.507059e+37
        %v289 = vand.u32 %v248, 2147483648
        %v290 = vor.u32 1.1754944e-38, %v289
        %v291 = vsel %vm288, %v290, %v286
        %v292 = vrcp.pop %v249
        %v293 = vmul.f32 %v249, %v292
        %v294 = vsub.f32 1.0, %v293
        %v295 = vmul.f32 %v292, %v294
        %v296 = vadd.f32 %v292, %v295
        %vm297 = vweird.f32 %v249
        %vm298 = vweird.f32 %v292
        %vm299 = vmor %vm297, %vm298
        %v300 = vsel %vm299, %v292, %v296
        %v301 = vand.u32 2147483647, %v249
        %vm302 = vcmp.eq.f32.partialorder %v301, 8.507059e+37
        %v303 = vand.u32 %v249, 2147483648
        %v304 = vor.u32 1.1754944e-38, %v303
        %v305 = vsel %vm302, %v304, %v300
        %v306 = vld [vmem:[%s227] sm:$0xff]
        %v307 = vld [vmem:[%s227 + $0x8] sm:$0xff]
        %v308 = vld [vmem:[%s227 + $0x10] sm:$0xff]
        %v309 = vld [vmem:[%s227 + $0x18] sm:$0xff]
        %v310 = vld [vmem:[%s194] sm:$0xff]
        %v311 = vld [vmem:[%s194 + $0x8] sm:$0xff]
        %v312 = vld [vmem:[%s194 + $0x10] sm:$0xff]
        %v313 = vld [vmem:[%s194 + $0x18] sm:$0xff]
        %v314 = vsub.f32 %v306, %v310
        %v315 = vsub.f32 %v307, %v311
        %v316 = vsub.f32 %v308, %v312
        %v317 = vsub.f32 %v309, %v313
        %319 = vset.pattern.permute.xlu0 0
        %320 = vperm.xlu0 %319, %v263
        %v321 = vpop.permute.xlu0 %320
        %324 = vset.pattern.permute.xlu0 0
        %325 = vperm.xlu0 %324, %v277
        %v326 = vpop.permute.xlu0 %325
        %329 = vset.pattern.permute.xlu0 0
        %330 = vperm.xlu0 %329, %v291
        %v331 = vpop.permute.xlu0 %330
        %334 = vset.pattern.permute.xlu0 0
        %335 = vperm.xlu0 %334, %v305
        %v336 = vpop.permute.xlu0 %335
        %v338 = vmul.f32 %v314, %v321
        %v339 = vmul.f32 %v315, %v326
        %v340 = vmul.f32 %v316, %v331
        %v341 = vmul.f32 %v317, %v336
        %v342 = vld [vmem:[#allocation2] sm:$0xff]
        %v343 = vld [vmem:[#allocation2 + $0x8] sm:$0xff]
        %v344 = vld [vmem:[#allocation2 + $0x10] sm:$0xff]
        %v345 = vld [vmem:[#allocation2 + $0x18] sm:$0xff]
        %v346 = vmul.f32 %v338, %v338
        %v347 = vmul.f32 %v339, %v339
        %v348 = vmul.f32 %v340, %v340
        %v349 = vmul.f32 %v341, %v341
        %v350 = vadd.f32 %v342, %v346
        %v351 = vadd.f32 %v343, %v347
        %v352 = vadd.f32 %v344, %v348
        %v353 = vadd.f32 %v345, %v349
        %354 = vst [vmem:[#allocation2] sm:$0xff] %v350
        %355 = vst [vmem:[#allocation2 + $0x8] sm:$0xff] %v351
        %356 = vst [vmem:[#allocation2 + $0x10] sm:$0xff] %v352
        %357 = vst [vmem:[#allocation2 + $0x18] sm:$0xff] %v353
        // Predicated region
        $region41: #{tpu_custom_call.1} parent=31 // pred_check
          %p358 = pneg %p235
        $region42: #{tpu_custom_call.1} parent=31 // pred_check_branch
          %360 = sbr.rel (%p358) target = $region44
        $region43: #{tpu_custom_call.1} parent=31 // pred_region
          %v361 = vld [vmem:[#allocation2] sm:$0xff]
          %v362 = vld [vmem:[#allocation2 + $0x8] sm:$0xff]
          %v363 = vld [vmem:[#allocation2 + $0x10] sm:$0xff]
          %v364 = vld [vmem:[#allocation2 + $0x18] sm:$0xff]
          %v365 = vadd.f32 %v361, %v362
          %v366 = vadd.f32 %v365, %v363
          %v367 = vadd.f32 %v366, %v364
          %368 = vadd.xlane.f32.xlu0 %v367
          %v369 = vpop.xlane.xlu0 %368
          %v370 = vrot.slane %v369, 4
          %v371 = vadd.f32 %v369, %v370
          %v372 = vrot.slane %v371, 2
          %v373 = vadd.f32 %v371, %v372
          %v374 = vrot.slane %v373, 1
          %v375 = vadd.f32 %v373, %v374
          %s376 = vtos %v375
          %v377 = vstv %s376
          %vm378 = vcmask 0
          %379 = vst.msk [vmem:[%s234] sm:$0x1] %vm378, %v377
        $region44: #{tpu_custom_call.1} parent=31 // pred_fallthru
          _
        %p380 = scmp.lt.s32.totalorder %s21, 1
        %s381 = scalar_select %p380, %s21, 1
        %s382 = scalar_lea.vmem %s3, %s381
        // Predicated region
        $region45: #{tpu_custom_call.1} parent=31 // pred_check
          %p383 = pneg %p124
        $region46: #{tpu_custom_call.1} parent=31 // pred_check_branch
          %385 = sbr.rel (%p383) target = $region48
        $region47: #{tpu_custom_call.1} parent=31 // pred_region
          _
        $region48: #{tpu_custom_call.1} parent=31 // pred_fallthru
          _
      $region32: #{tpu_custom_call.1} parent=5 // pred_fallthru
        _
      %p386 = scmp.le.s32.totalorder 2, %s12
      // Predicated region
      $region49: #{tpu_custom_call.1} parent=5 // pred_check
        %p387 = pneg %p386
      $region50: #{tpu_custom_call.1} parent=5 // pred_check_branch
        %389 = sbr.rel (%p387) target = $region52
      $region51: #{tpu_custom_call.1} parent=5 // pred_region
        %s390 = ssub.s32 %s12, 2
        // Predicated region
        $region53: #{tpu_custom_call.1} parent=51 // pred_check
          %p391 = pneg %p130
        $region54: #{tpu_custom_call.1} parent=51 // pred_check_branch
          %393 = sbr.rel (%p391) target = $region56
        $region55: #{tpu_custom_call.1} parent=51 // pred_region
          %p394 = scmp.lt.s32.totalorder %s23, 1
          %s395 = scalar_select %p394, %s23, 1
          %s396 = scalar_lea.vmem %s3, %s395
        $region56: #{tpu_custom_call.1} parent=51 // pred_fallthru
          _
      $region52: #{tpu_custom_call.1} parent=5 // pred_fallthru
        _
    $region6: #{tpu_custom_call.1} parent=1 // loop_footer
      %s16 = sadd.s32 1, %s12
    $region7: #{tpu_custom_call.1} parent=1 // loop_footer_branch
      %11 = sbr.rel target = $region3
    $region8: #{tpu_custom_call.1} parent=1 // loop_exit
      _
    %397 = vsyncpa [#allocation4], 1
    %s398 = scalar_lea.sflag [#allocation4], 1
    %399 = vsyncpa %s398, 1

</llo_original>
